<compile_context>
chip_gen: v7x
topology: tpu7x:2x2x1
jax: 0.10.0
libtpu: 0.0.40
codegen_flags: <defaults>
</compile_context>

<pallas_src>
import functools

import jax
import jax.numpy as jnp
from jax.experimental import pallas as pl
from jax.experimental.pallas import tpu as pltpu


_CHUNK_TARGET_BYTES = 4 * 1024 * 1024   # ~4 MiB per DMA chunk
_MAX_TOTAL_DMAS = 16                    # bounds in-flight depth & semaphore scratch
_NUM_ISSUE_PROGRAMS = 2                 # v7x: one issuing program per TensorCore
_SMALL_BYTES_THRESHOLD = 256 * 1024     # below this, XLA's fused concat wins
_MIN_ROW_BYTES = 512                    # shorter rows are DMA-descriptor-bound
_LANE = 128                             # minor-dim tile width (elements)


def _concat_dma_kernel(n_inputs, prog_chunks, lead, *refs):
    """refs = (*in_hbm_refs, out_hbm_ref, dma_sems).

    prog_chunks[p] is a static list of (input_idx, row_start, rows, dst_col,
    cols) chunks issued by grid program p.  All DMAs of a program are started
    back-to-back (so they overlap on the DMA engines), then all are waited.
    """
    in_refs = refs[:n_inputs]
    out_ref = refs[n_inputs]
    sems = refs[n_inputs + 1]
    prog = pl.program_id(0)

    for p, chunks in enumerate(prog_chunks):
        if not chunks:
            continue

        @pl.when(prog == p)
        def _issue(chunks=chunks, p=p):
            copies = []
            for j, (i, r0, rc, c0, cc) in enumerate(chunks):
                if r0 == 0 and rc == lead:
                    src = in_refs[i]                         # whole input slab
                    dst = out_ref.at[:, c0:c0 + cc]
                else:
                    src = in_refs[i].at[r0:r0 + rc, :]
                    dst = out_ref.at[r0:r0 + rc, c0:c0 + cc]
                cp = pltpu.make_async_copy(src, dst, sems.at[p, j])
                cp.start()
                copies.append(cp)
            for cp in copies:
                cp.wait()


def _build_row_chunks(lead, sizes, offsets, itemsize):
    """Split each (lead, sizes[i]) slab into ~_CHUNK_TARGET_BYTES row-chunks,
    keeping the total DMA count bounded and row boundaries sublane-aligned."""
    sublane = max(8, 32 // max(itemsize, 1))     # f32:8, bf16:16, int8:32
    cap = max(_MAX_TOTAL_DMAS, len(sizes))
    target = _CHUNK_TARGET_BYTES
    while True:
        chunks = []
        for i, (sz, off) in enumerate(zip(sizes, offsets)):
            row_bytes = max(sz * itemsize, 1)
            rows = max(1, target // row_bytes)
            if rows < lead:
                rows = max(sublane, (rows // sublane) * sublane)
            rows = min(rows, lead)
            # TODO(synk): also sub-chunk very wide single-row slabs along
            # 128-aligned column blocks to raise DMA concurrency when lead==1.
            r0 = 0
            while r0 < lead:
                rc = min(rows, lead - r0)
                chunks.append((i, r0, rc, off, sz))
                r0 += rc
        if len(chunks) <= cap:
            return chunks
        target *= 2


def concatenate(inputs, dim=1, *, force_pallas=False):
    """Equivalent of torch.cat(inputs, dim): HBM->HBM Pallas DMAs for large,
    lane-aligned concats; jnp.concatenate for tiny / unaligned / degenerate
    cases."""
    inputs = list(inputs)
    assert len(inputs) >= 1
    rank = inputs[0].ndim
    if dim < 0:
        dim += rank
    dtype = inputs[0].dtype
    base_shape = inputs[0].shape
    for x in inputs:
        assert x.ndim == rank, "all inputs must have the same rank"
        assert x.dtype == dtype, "all inputs must share a dtype"
        for d in range(rank):
            if d != dim:
                assert x.shape[d] == base_shape[d], "non-concat dims must match"

    out_shape = list(base_shape)
    out_shape[dim] = sum(x.shape[dim] for x in inputs)
    out_shape = tuple(out_shape)

    # Skip zero-width operands; degenerate shapes go straight to XLA.
    nonzero = [x for x in inputs if x.shape[dim] != 0]
    if len(nonzero) <= 1 or any(s == 0 for s in out_shape):
        return jnp.concatenate(inputs, axis=dim)

    # Flatten to 2D so the concat becomes a flat-offset contiguous copy:
    #   lead  = prod(shape[:dim])   -> rows
    #   trail = prod(shape[dim:])   -> contiguous elements per row per input
    # For NCHW / dim=1 this is (N, C_i*H*W); with H*W a multiple of 128 every
    # offset and size is lane-aligned, so the DMAs hit no masked partial tiles.
    def _flat2d(x):
        lead = 1
        for d in x.shape[:dim]:
            lead *= d
        trail = 1
        for d in x.shape[dim:]:
            trail *= d
        return x.reshape(lead, trail)

    flat_inputs = [_flat2d(x) for x in nonzero]
    lead = flat_inputs[0].shape[0]
    sizes = tuple(int(x.shape[1]) for x in flat_inputs)
    offsets = []
    off = 0
    for sz in sizes:
        offsets.append(off)
        off += sz
    offsets = tuple(offsets)
    total_width = off
    itemsize = jnp.dtype(dtype).itemsize
    total_bytes = lead * total_width * itemsize

    # Dispatch guards (perf review): tiny concats, unaligned column offsets /
    # widths, and very short rows lose to XLA's fused concat on all TPU gens.
    aligned = all(o % _LANE == 0 and s % _LANE == 0 for o, s in zip(offsets, sizes))
    long_rows = all(s * itemsize >= _MIN_ROW_BYTES for s in sizes)
    big_enough = force_pallas or total_bytes >= _SMALL_BYTES_THRESHOLD
    if not (aligned and long_rows and big_enough):
        # TODO(synk): add a VMEM-staged Pallas fallback (tiles sized for v7x's
        # 64 MiB VMEM, vmem_limit_bytes set explicitly) for unaligned or
        # short-row concats instead of deferring to jnp.concatenate.
        return jnp.concatenate(inputs, axis=dim)

    # Build ~4 MiB row-chunks per input (bounded total) and round-robin them
    # across the issuing programs (one per TensorCore on v7x).
    chunks = _build_row_chunks(lead, sizes, offsets, itemsize)
    num_progs = max(1, min(_NUM_ISSUE_PROGRAMS, len(chunks)))
    prog_chunks = [chunks[p::num_progs] for p in range(num_progs)]
    max_per_prog = max(len(c) for c in prog_chunks)

    kernel = functools.partial(
        _concat_dma_kernel, len(flat_inputs), prog_chunks, lead)

    flat_out = pl.pallas_call(
        kernel,
        out_shape=jax.ShapeDtypeStruct((lead, total_width), dtype),
        grid=(num_progs,),
        # Everything stays in HBM; the kernel body only drives DMA engines.
        in_specs=[pl.BlockSpec(memory_space=pl.ANY) for _ in flat_inputs],
        out_specs=pl.BlockSpec(memory_space=pl.ANY),
        scratch_shapes=[pltpu.SemaphoreType.DMA((num_progs, max_per_prog))],
        compiler_params=pltpu.CompilerParams(dimension_semantics=("parallel",)),
    )(*flat_inputs)

    return flat_out.reshape(out_shape)


if __name__ == "__main__":
    key = jax.random.PRNGKey(0)
    k1, k2, k3, k4, k5 = jax.random.split(key, 5)

    # Small NCHW inputs, concatenated along the channel dim (dim=1), matching
    # the PyTorch module's default.
    x1 = jax.random.normal(k1, (2, 4, 16, 16), dtype=jnp.float32)
    x2 = jax.random.normal(k2, (2, 3, 16, 16), dtype=jnp.float32)
    x3 = jax.random.normal(k3, (2, 5, 16, 16), dtype=jnp.float32)
    ref = jnp.concatenate([x1, x2, x3], axis=1)

    # Exercise the Pallas HBM->HBM DMA kernel (bypass the small-size fast path).
    out = concatenate([x1, x2, x3], dim=1, force_pallas=True)
    out = jax.block_until_ready(out)
    assert out.shape == (2, 12, 16, 16), out.shape
    assert out.dtype == jnp.float32
    assert jnp.array_equal(out, ref), "mismatch vs jnp.concatenate reference"

    # Default dispatch: tiny concat -> small-size fast path; must agree too.
    out_small = jax.block_until_ready(concatenate([x1, x2, x3], dim=1))
    assert jnp.array_equal(out_small, ref)

    # Unaligned spatial size (H*W = 49) routes through the alignment guard.
    y1 = jax.random.normal(k4, (2, 4, 7, 7), dtype=jnp.float32)
    y2 = jax.random.normal(k5, (2, 3, 7, 7), dtype=jnp.float32)
    out_u = jax.block_until_ready(concatenate([y1, y2], dim=1))
    assert jnp.array_equal(out_u, jnp.concatenate([y1, y2], axis=1))

    print("KERNEL_OK")
</pallas_src>

<mosaic_0001>
module attributes {stable_mosaic.version = 11 : i64} {
  func.func @_concat_dma_kernel(%arg0: i32, %arg1: memref<2x1024xf32, #tpu.memory_space<any>>, %arg2: memref<2x768xf32, #tpu.memory_space<any>>, %arg3: memref<2x1280xf32, #tpu.memory_space<any>>, %arg4: memref<2x3072xf32, #tpu.memory_space<any>>, %arg5: memref<2x2x!tpu.dma_semaphore, #tpu.memory_space<semaphore_mem>>) attributes {dimension_semantics = [#tpu.dimension_semantics<parallel>], iteration_bounds = array<i64: 2>, scalar_prefetch = 0 : i64, scratch_operands = 1 : i64, tpu.core_type = #tpu.core_type<tc>, window_params = [{}, {}, {}, {}]} {
    %c0_i32 = arith.constant 0 : i32
    %0 = arith.cmpi eq, %arg0, %c0_i32 : i32
    %1 = arith.extui %0 : i1 to i32
    %c0_i32_0 = arith.constant 0 : i32
    %2 = arith.cmpi ne, %1, %c0_i32_0 : i32
    scf.if %2 {
      %c0_i32_2 = arith.constant 0 : i32
      %c0_i32_3 = arith.constant 0 : i32
      %c0_i32_4 = arith.constant 0 : i32
      %c0_i32_5 = arith.constant 0 : i32
      %6 = tpu.memref_slice %arg4[%c0_i32_4, %c0_i32_5] : memref<2x3072xf32, #tpu.memory_space<any>> -> memref<2x1024xf32, #tpu.memory_space<any>>
      %7 = tpu.memref_slice %arg5[%c0_i32_2, %c0_i32_3] : memref<2x2x!tpu.dma_semaphore, #tpu.memory_space<semaphore_mem>> -> memref<1x1x!tpu.dma_semaphore, #tpu.memory_space<semaphore_mem>>
      %8 = tpu.memref_squeeze %7 : memref<1x1x!tpu.dma_semaphore, #tpu.memory_space<semaphore_mem>> -> memref<!tpu.dma_semaphore, #tpu.memory_space<semaphore_mem>>
      tpu.enqueue_dma source(%arg1 : memref<2x1024xf32, #tpu.memory_space<any>>) target(%6 : memref<2x1024xf32, #tpu.memory_space<any>>) target_semaphore(%8 : memref<!tpu.dma_semaphore, #tpu.memory_space<semaphore_mem>>)
      %c0_i32_6 = arith.constant 0 : i32
      %c1_i32_7 = arith.constant 1 : i32
      %c0_i32_8 = arith.constant 0 : i32
      %c1792_i32 = arith.constant 1792 : i32
      %9 = tpu.memref_slice %arg4[%c0_i32_8, %c1792_i32] : memref<2x3072xf32, #tpu.memory_space<any>> -> memref<2x1280xf32, #tpu.memory_space<any>>
      %10 = tpu.memref_slice %arg5[%c0_i32_6, %c1_i32_7] : memref<2x2x!tpu.dma_semaphore, #tpu.memory_space<semaphore_mem>> -> memref<1x1x!tpu.dma_semaphore, #tpu.memory_space<semaphore_mem>>
      %11 = tpu.memref_squeeze %10 : memref<1x1x!tpu.dma_semaphore, #tpu.memory_space<semaphore_mem>> -> memref<!tpu.dma_semaphore, #tpu.memory_space<semaphore_mem>>
      tpu.enqueue_dma source(%arg3 : memref<2x1280xf32, #tpu.memory_space<any>>) target(%9 : memref<2x1280xf32, #tpu.memory_space<any>>) target_semaphore(%11 : memref<!tpu.dma_semaphore, #tpu.memory_space<semaphore_mem>>)
      %c0_i32_9 = arith.constant 0 : i32
      %c0_i32_10 = arith.constant 0 : i32
      %c0_i32_11 = arith.constant 0 : i32
      %c0_i32_12 = arith.constant 0 : i32
      %12 = tpu.memref_slice %arg4[%c0_i32_11, %c0_i32_12] : memref<2x3072xf32, #tpu.memory_space<any>> -> memref<2x1024xf32, #tpu.memory_space<any>>
      %13 = tpu.memref_slice %arg5[%c0_i32_9, %c0_i32_10] : memref<2x2x!tpu.dma_semaphore, #tpu.memory_space<semaphore_mem>> -> memref<1x1x!tpu.dma_semaphore, #tpu.memory_space<semaphore_mem>>
      %14 = tpu.memref_squeeze %13 : memref<1x1x!tpu.dma_semaphore, #tpu.memory_space<semaphore_mem>> -> memref<!tpu.dma_semaphore, #tpu.memory_space<semaphore_mem>>
      tpu.wait_dma2 semaphore(%14 : memref<!tpu.dma_semaphore, #tpu.memory_space<semaphore_mem>>) src(%arg1 : memref<2x1024xf32, #tpu.memory_space<any>>) dst(%12 : memref<2x1024xf32, #tpu.memory_space<any>>)
      %c0_i32_13 = arith.constant 0 : i32
      %c1_i32_14 = arith.constant 1 : i32
      %c0_i32_15 = arith.constant 0 : i32
      %c1792_i32_16 = arith.constant 1792 : i32
      %15 = tpu.memref_slice %arg4[%c0_i32_15, %c1792_i32_16] : memref<2x3072xf32, #tpu.memory_space<any>> -> memref<2x1280xf32, #tpu.memory_space<any>>
      %16 = tpu.memref_slice %arg5[%c0_i32_13, %c1_i32_14] : memref<2x2x!tpu.dma_semaphore, #tpu.memory_space<semaphore_mem>> -> memref<1x1x!tpu.dma_semaphore, #tpu.memory_space<semaphore_mem>>
      %17 = tpu.memref_squeeze %16 : memref<1x1x!tpu.dma_semaphore, #tpu.memory_space<semaphore_mem>> -> memref<!tpu.dma_semaphore, #tpu.memory_space<semaphore_mem>>
      tpu.wait_dma2 semaphore(%17 : memref<!tpu.dma_semaphore, #tpu.memory_space<semaphore_mem>>) src(%arg3 : memref<2x1280xf32, #tpu.memory_space<any>>) dst(%15 : memref<2x1280xf32, #tpu.memory_space<any>>)
    } else {
    }
    %c1_i32 = arith.constant 1 : i32
    %3 = arith.cmpi eq, %arg0, %c1_i32 : i32
    %4 = arith.extui %3 : i1 to i32
    %c0_i32_1 = arith.constant 0 : i32
    %5 = arith.cmpi ne, %4, %c0_i32_1 : i32
    scf.if %5 {
      %c1_i32_2 = arith.constant 1 : i32
      %c0_i32_3 = arith.constant 0 : i32
      %c0_i32_4 = arith.constant 0 : i32
      %c1024_i32 = arith.constant 1024 : i32
      %6 = tpu.memref_slice %arg4[%c0_i32_4, %c1024_i32] : memref<2x3072xf32, #tpu.memory_space<any>> -> memref<2x768xf32, #tpu.memory_space<any>>
      %7 = tpu.memref_slice %arg5[%c1_i32_2, %c0_i32_3] : memref<2x2x!tpu.dma_semaphore, #tpu.memory_space<semaphore_mem>> -> memref<1x1x!tpu.dma_semaphore, #tpu.memory_space<semaphore_mem>>
      %8 = tpu.memref_squeeze %7 : memref<1x1x!tpu.dma_semaphore, #tpu.memory_space<semaphore_mem>> -> memref<!tpu.dma_semaphore, #tpu.memory_space<semaphore_mem>>
      tpu.enqueue_dma source(%arg2 : memref<2x768xf32, #tpu.memory_space<any>>) target(%6 : memref<2x768xf32, #tpu.memory_space<any>>) target_semaphore(%8 : memref<!tpu.dma_semaphore, #tpu.memory_space<semaphore_mem>>)
      %c1_i32_5 = arith.constant 1 : i32
      %c0_i32_6 = arith.constant 0 : i32
      %c0_i32_7 = arith.constant 0 : i32
      %c1024_i32_8 = arith.constant 1024 : i32
      %9 = tpu.memref_slice %arg4[%c0_i32_7, %c1024_i32_8] : memref<2x3072xf32, #tpu.memory_space<any>> -> memref<2x768xf32, #tpu.memory_space<any>>
      %10 = tpu.memref_slice %arg5[%c1_i32_5, %c0_i32_6] : memref<2x2x!tpu.dma_semaphore, #tpu.memory_space<semaphore_mem>> -> memref<1x1x!tpu.dma_semaphore, #tpu.memory_space<semaphore_mem>>
      %11 = tpu.memref_squeeze %10 : memref<1x1x!tpu.dma_semaphore, #tpu.memory_space<semaphore_mem>> -> memref<!tpu.dma_semaphore, #tpu.memory_space<semaphore_mem>>
      tpu.wait_dma2 semaphore(%11 : memref<!tpu.dma_semaphore, #tpu.memory_space<semaphore_mem>>) src(%arg2 : memref<2x768xf32, #tpu.memory_space<any>>) dst(%9 : memref<2x768xf32, #tpu.memory_space<any>>)
    } else {
    }
    return
  }
}

</mosaic_0001>

<llo_original>
// kernel: tpu_custom_call.1
$region0: #{tpu_custom_call.1}
  #allocation0 [shape = 'u32[]', space=smem, size = 0x4, offset = 0x4, fixed_abs, tag = 'smem constant byte address 0x4 - core index']
  #allocation1 [shape = 'u32[144,128]{1,0:T(1,128)}', space=vmem, size = 0x12000, scoped, tag = 'internal scratch']
  #allocation2 [shape = 's32[4]{0}', space=sflag, size = 0x10, scoped, tag = 'scratch operand']
  #allocation3 [shape = 's32[]', space=sflag, size = 0x4, offset = 0, fixed_abs, tag = 'sflag constant byte address 0x0 - dummy sync flag']
  #allocation4 [shape = 'u32[0]{0}', space=smem, size = 0, offset = 0, fixed_abs, tag = 'smem constant byte address 0x0 - null']
  #allocation5 [shape = 's32[]', space=sflag, size = 0x4, offset = 0, fixed_abs, tag = 'sflag constant byte address 0x0 - dummy sync flag']
  #allocation6 [shape = 'u32[0]{0}', space=smem, size = 0, offset = 0, fixed_abs, tag = 'smem constant byte address 0x0 - null']
  #allocation7 [shape = 's32[]', space=sflag, size = 0x4, offset = 0, fixed_abs, tag = 'sflag constant byte address 0x0 - dummy sync flag']
  #allocation8 [shape = 'u32[0]{0}', space=smem, size = 0, offset = 0, fixed_abs, tag = 'smem constant byte address 0x0 - null']
  %s0 = inlined_call_operand.hbm [shape: f32[2,1024], index: 0, kind: input, shape index: {}]
  %s1 = inlined_call_operand.hbm [shape: f32[2,768], index: 1, kind: input, shape index: {}]
  %s2 = inlined_call_operand.hbm [shape: f32[2,1280], index: 2, kind: input, shape index: {}]
  %s3 = inlined_call_operand.hbm [shape: f32[2,3072], index: 3, kind: output, shape index: {}]
  %s4 = sld [smem:[#allocation0]]
  $region17: #{tpu_custom_call.1} parent=0
    _
  %s6 = ssub.s32 1, %s4
  %s7 = scalar_select 0, %s6, %s4
  loop: start=0, step=1, limit=2
  $region2: #{tpu_custom_call.1} parent=0 // loop_pre_header
    _
  $region3: #{tpu_custom_call.1} parent=0 // loop_header
    %s9 = sphi 0, %s13
    %p10 = scmp.ge.s32.totalorder %s9, 2
  $region4: #{tpu_custom_call.1} parent=0 // loop_header_branch
    %12 = sbr.rel (%p10) target = $region8
  $region5: #{tpu_custom_call.1} parent=0 // loop_body
    %s14 = sadd.s32 %s9, 1
    %p15 = scmp.eq.s32.totalorder %s9, 0
    // Predicated region
    $region9: #{tpu_custom_call.1} parent=5 // pred_check
      %p16 = pneg %p15
    $region10: #{tpu_custom_call.1} parent=5 // pred_check_branch
      %18 = sbr.rel (%p16) target = $region12
    $region11: #{tpu_custom_call.1} parent=5 // pred_region
      %s20 = sshll.u32 1, 14
      %s21 = sxor.u32 4294967295, %s20
      %s24 = sshll.u32 3, 24
      %s25 = sxor.u32 4294967295, %s24
      %s26 = sand.u32 0, %s25
      %s28 = sor.u32 %s26, 0
      %31 = dma.general %s0, 256, %s3, [#allocation2], [#allocation3], [#allocation4], %s28, 0
      %s32 = scalar_lea.hbm %s3, 448
      %s33 = scalar_lea.sflag [#allocation2], 1
      %s35 = sshll.u32 1, 14
      %s36 = sxor.u32 4294967295, %s35
      %s39 = sshll.u32 3, 24
      %s40 = sxor.u32 4294967295, %s39
      %s41 = sand.u32 0, %s40
      %s43 = sor.u32 %s41, 0
      %46 = dma.general %s2, 320, %s32, %s33, [#allocation5], [#allocation6], %s43, 0
      %s47 = smul.u32 2, 1
      %s48 = smul.u32 %s47, 8
      %s49 = sshll.u32 %s48, 4
      %50 = dma.done [#allocation2], %s49
      %s51 = smul.u32 %s47, 10
      %s52 = sshll.u32 %s51, 4
      %53 = dma.done %s33, %s52
    $region12: #{tpu_custom_call.1} parent=5 // pred_fallthru
      _
    %p54 = scmp.eq.s32.totalorder %s9, 1
    // Predicated region
    $region13: #{tpu_custom_call.1} parent=5 // pred_check
      %p55 = pneg %p54
    $region14: #{tpu_custom_call.1} parent=5 // pred_check_branch
      %57 = sbr.rel (%p55) target = $region16
    $region15: #{tpu_custom_call.1} parent=5 // pred_region
      %s58 = scalar_lea.hbm %s3, 256
      %s59 = scalar_lea.sflag [#allocation2], 2
      %s61 = sshll.u32 1, 14
      %s62 = sxor.u32 4294967295, %s61
      %s65 = sshll.u32 3, 24
      %s66 = sxor.u32 4294967295, %s65
      %s67 = sand.u32 0, %s66
      %s69 = sor.u32 %s67, 0
      %72 = dma.general %s1, 192, %s58, %s59, [#allocation7], [#allocation8], %s69, 0
      %s73 = smul.u32 2, 1
      %s74 = smul.u32 %s73, 6
      %s75 = sshll.u32 %s74, 4
      %76 = dma.done %s59, %s75
    $region16: #{tpu_custom_call.1} parent=5 // pred_fallthru
      _
  $region6: #{tpu_custom_call.1} parent=0 // loop_footer
    %s13 = sadd.s32 1, %s9
  $region7: #{tpu_custom_call.1} parent=0 // loop_footer_branch
    %8 = sbr.rel target = $region3
  $region8: #{tpu_custom_call.1} parent=0 // loop_exit
    _
  %77 = vsyncmov [#allocation2]
  %s78 = vpop.sfrf %77
  %p79 = scmp.eq.s32.totalorder %s78, 0
  %p80 = pneg %p79
  %82 = shalt.err (%p80)
  %s83 = scalar_lea.sflag [#allocation2], 1
  %84 = vsyncmov %s83
  %s85 = vpop.sfrf %84
  %p86 = scmp.eq.s32.totalorder %s85, 0
  %p87 = pneg %p86
  %89 = shalt.err (%p87)
  %s90 = scalar_lea.sflag [#allocation2], 2
  %91 = vsyncmov %s90
  %s92 = vpop.sfrf %91
  %p93 = scmp.eq.s32.totalorder %s92, 0
  %p94 = pneg %p93
  %96 = shalt.err (%p94)
  %s97 = scalar_lea.sflag [#allocation2], 3
  %98 = vsyncmov %s97
  %s99 = vpop.sfrf %98
  %p100 = scmp.eq.s32.totalorder %s99, 0
  %p101 = pneg %p100
  %103 = shalt.err (%p101)

</llo_original>
